<compile_context>
chip_gen: v5e
topology: v5e:2x2
jax: 0.10.0
libtpu: 0.0.40
codegen_flags: <defaults>
</compile_context>

<pallas_src>
import functools
import math

import jax
import jax.numpy as jnp
from jax.experimental import pallas as pl
from jax.experimental.pallas import tpu as pltpu


def _round_up(a: int, b: int) -> int:
    return (a + b - 1) // b * b


def multi_gcn_kernel(
    adj_ref,     # resident: (ndir*n_pad, n_pad) bf16 | streamed: (tm, n_pad) int8/bf16
    gic_ref,     # resident: (ndir*n_pad, 3H) f32    | streamed: (tm, 3H) f32
    wnext_ref,   # (H, 3H) f32   folded AggConv weight of the NEXT half-round's direction
    g0_ref,      # (1, 3H) f32   ones(1,H) @ W_comb[dir0]   (g row for half-round 0)
    whh_ref,     # (H, 3H) f32   Whh^T of the current direction
    bhh_ref,     # (1, 3H) f32   b_hh of the current direction
    gamma_ref,   # (1, H) f32
    beta_ref,    # (1, H) f32
    state_ref,   # OUT (n_pad, H) f32 — persistent node state (written back once)
    g_ref,       # scratch (2*n_pad, 3H) bf16 — ping-pong aggregation operand
    *, layernorm: bool, eps: float, ndir: int, tm: int, resident: bool):
    rnd = pl.program_id(0)   # round
    dr = pl.program_id(1)    # direction: 0 = forward, 1 = reverse
    blk = pl.program_id(2)   # row block

    n_pad, hd = state_ref.shape
    g3 = g_ref.shape[1]
    row0 = pl.multiple_of(blk * tm, tm)

    half = rnd * ndir + dr        # half-round index
    slot = half % 2               # ping-pong slot holding the CURRENT g
    nxt = 1 - slot

    # ---- very first grid step: state = ones, g slot 0 = ones @ W_comb[dir0] --
    @pl.when((rnd == 0) & (dr == 0) & (blk == 0))
    def _init():
        state_ref[...] = jnp.ones((n_pad, hd), jnp.float32)
        g_ref[pl.ds(0, n_pad), :] = jnp.broadcast_to(
            g0_ref[...], (n_pad, g3)).astype(g_ref.dtype)

    # ---- fetch this block's adjacency rows and round-invariant GRU input ----
    if resident:
        roff = pl.multiple_of(dr * n_pad + blk * tm, tm)
        a_blk = adj_ref[pl.ds(roff, tm), :]
        gic = gic_ref[pl.ds(roff, tm), :]
    else:
        a_blk = adj_ref[...]
        gic = gic_ref[...]
    if a_blk.dtype != jnp.bfloat16:
        # int8 (or f32) storage -> bf16 MXU feed; VPU work hidden under the DMA.
        a_blk = a_blk.astype(jnp.float32).astype(jnp.bfloat16)

    # ---- GRU update (PyTorch gate order r, z, n) for this row block ---------
    # gi = A_blk @ g + (x Wih_x^T + b_ih + deg*(ba Wih_m^T))   [folded/hoisted]
    g_off = pl.multiple_of(slot * n_pad, tm)
    gi = jnp.dot(a_blk, g_ref[pl.ds(g_off, n_pad), :],
                 preferred_element_type=jnp.float32) + gic               # (tm, 3H)

    h = state_ref[pl.ds(row0, tm), :]                                    # (tm, H)
    gh = jnp.dot(h, whh_ref[...],
                 preferred_element_type=jnp.float32) + bhh_ref[...]      # (tm, 3H)

    r_g = jax.nn.sigmoid(gi[:, :hd] + gh[:, :hd])
    z_g = jax.nn.sigmoid(gi[:, hd:2 * hd] + gh[:, hd:2 * hd])
    n_g = jnp.tanh(gi[:, 2 * hd:] + r_g * gh[:, 2 * hd:])
    h_new = (1.0 - z_g) * n_g + z_g * h

    if layernorm:
        mu = jnp.mean(h_new, axis=-1, keepdims=True)
        var = jnp.mean((h_new - mu) ** 2, axis=-1, keepdims=True)
        h_new = ((h_new - mu) * jax.lax.rsqrt(var + eps)
                 * gamma_ref[...] + beta_ref[...])

    # in-place state update: the output ref IS the recurrent state
    state_ref[pl.ds(row0, tm), :] = h_new

    # ---- distributed snapshot: this block's g rows for the NEXT half-round --
    gn_off = pl.multiple_of(nxt * n_pad + row0, tm)
    g_ref[pl.ds(gn_off, tm), :] = jnp.dot(
        h_new, wnext_ref[...],
        preferred_element_type=jnp.float32).astype(g_ref.dtype)


def build_graph(edge_index, num_nodes, enable_reverse, block_rows=None):
    """Per-graph preprocessing (run ONCE per graph, not per forward call)."""
    if block_rows is None:
        # power-of-two multiple of 32 so the encoder's fit-loop can halve it
        block_rows = min(256, max(32, 1 << int(math.ceil(math.log2(
            _round_up(num_nodes, 32))))))
        block_rows = min(block_rows, 256)
    assert block_rows % 32 == 0 and block_rows > 0
    n_pad = _round_up(num_nodes, block_rows)
    ndir = 2 if enable_reverse else 1

    src, dst = edge_index[0], edge_index[1]
    mats = [jnp.zeros((n_pad, n_pad), jnp.float32).at[dst, src].add(1.0)]
    if enable_reverse:
        mats.append(jnp.zeros((n_pad, n_pad), jnp.float32).at[src, dst].add(1.0))
    adj_stack = jnp.stack(mats)                            # (ndir, n_pad, n_pad)
    deg = jnp.sum(adj_stack, axis=-1, keepdims=True)       # (ndir, n_pad, 1)
    adj_cat = adj_stack.reshape(ndir * n_pad, n_pad)       # [A_fwd ; A_rev]

    max_mult = float(jnp.max(adj_cat))
    if max_mult <= 127.0:
        # int8 storage halves the HBM-bound adjacency stream on every chip
        # generation (the kernel upcasts to bf16 before the MXU).
        adj_cat = adj_cat.astype(jnp.int8)
    else:
        assert max_mult <= 256.0, "adjacency multiplicity > 256 not exactly representable"
        adj_cat = adj_cat.astype(jnp.bfloat16)

    return dict(adj=adj_cat, deg=deg, n=int(num_nodes), n_pad=int(n_pad),
                block_rows=int(block_rows))


def fold_params(params, enable_reverse, dim_hidden):
    """Per-model preprocessing: fold the AggConv linear into the GRU input
    weight and pre-transpose everything (run once, reuse across calls)."""
    def one(sfx):
        wa, ba = params["wa" + sfx], params["ba" + sfx]
        wih, bih = params["wih" + sfx], params["bih" + sfx]
        whh, bhh = params["whh" + sfx], params["bhh" + sfx]
        wih_m_t = wih[:, :dim_hidden].T            # (H, 3H)  msg part of Wih^T
        wih_x_t = wih[:, dim_hidden:].T            # (F, 3H)  x   part of Wih^T
        w_comb = wa.T @ wih_m_t                    # (H, 3H)  folded AggConv
        bc = ba @ wih_m_t                          # (3H,)    per-unit-degree bias
        return w_comb, wih_x_t, bih, bc, whh.T, bhh

    sfxs = [""] + (["_r"] if enable_reverse else [])
    cols = list(zip(*[one(s) for s in sfxs]))
    stack = lambda xs: jnp.stack(list(xs))
    return dict(
        w_comb=stack(cols[0]).astype(jnp.float32),   # (ndir, H, 3H)
        wih_x_t=stack(cols[1]).astype(jnp.float32),  # (ndir, F, 3H)
        bih=stack(cols[2])[:, None, :].astype(jnp.float32),  # (ndir, 1, 3H)
        bc=stack(cols[3])[:, None, :].astype(jnp.float32),   # (ndir, 1, 3H)
        whh_t=stack(cols[4]).astype(jnp.float32),    # (ndir, H, 3H)
        bhh=stack(cols[5])[:, None, :].astype(jnp.float32),  # (ndir, 1, 3H)
        gamma=params["gamma"][None, :].astype(jnp.float32),  # (1, H)
        beta=params["beta"][None, :].astype(jnp.float32),    # (1, H)
    )


def multi_gcn_encoder(x, graph, folded, *, num_rounds, enable_reverse, layernorm,
                      force_streamed=False):
    n, n_pad = graph["n"], graph["n_pad"]
    tm = graph["block_rows"]
    ndir = 2 if enable_reverse else 1
    hd = folded["w_comb"].shape[1]
    g3 = folded["w_comb"].shape[2]
    fdim = x.shape[1]
    adj = graph["adj"]                                     # (ndir*n_pad, n_pad)
    assert adj.shape == (ndir * n_pad, n_pad)

    # Round-invariant GRU-input term, hoisted out of the kernel entirely.
    x_pad = jnp.zeros((n_pad, fdim), jnp.float32).at[:n].set(x.astype(jnp.float32))
    gi_const = (jnp.einsum("nf,dfh->dnh", x_pad, folded["wih_x_t"])
                + folded["bih"] + graph["deg"] * folded["bc"]).astype(jnp.float32)
    # g row for the first half-round: ones(1,H) @ W_comb[dir0]
    g0 = jnp.sum(folded["w_comb"][0], axis=0, keepdims=True).astype(jnp.float32)

    # ---- generation-aware VMEM budget (v5e/v6e 128 MiB, v7x 64 MiB) ---------
    try:
        vmem_cap = int(pltpu.get_tpu_info().vmem_capacity_bytes)
    except Exception:
        vmem_cap = 128 * 2 ** 20
    budget = int(vmem_cap * 0.85)        # leave compiler-scratch headroom

    small = [folded["w_comb"], g0, folded["whh_t"], folded["bhh"],
             folded["gamma"], folded["beta"]]
    small_bytes = 2 * sum(int(a.size) * a.dtype.itemsize for a in small)
    common_bytes = (small_bytes
                    + 2 * n_pad * hd * 4        # persistent state output
                    + 2 * n_pad * g3 * 2)       # ping-pong g scratch

    resident_bytes = (2 * ndir * n_pad * n_pad * 2     # resident bf16 adjacency
                      + 2 * ndir * n_pad * g3 * 4)     # resident f32 gi_const

    def streamed_bytes(tm_):
        return 2 * tm_ * n_pad * adj.dtype.itemsize + 2 * tm_ * g3 * 4

    resident = (not force_streamed) and (common_bytes + resident_bytes <= budget)
    if not resident:
        # shrink the streamed row block until the double-buffered stream fits
        while (tm >= 64 and tm % 64 == 0
               and common_bytes + streamed_bytes(tm) > budget):
            tm //= 2
        # TODO(synk): k-block the contraction instead of shrinking tm further.
    assert n_pad % tm == 0 and tm % 32 == 0
    nb = n_pad // tm

    # ---- specs ---------------------------------------------------------------
    if resident:
        adj_arr = adj.astype(jnp.bfloat16)                 # one-time cast / DMA
        gic_arr = gi_const.reshape(ndir * n_pad, g3)
        adj_spec = pl.BlockSpec((ndir * n_pad, n_pad), lambda r, d, b: (0, 0))
        gic_spec = pl.BlockSpec((ndir * n_pad, g3), lambda r, d, b: (0, 0))
    else:
        adj_arr = adj
        gic_arr = gi_const
        adj_spec = pl.BlockSpec((tm, n_pad), lambda r, d, b: (d * nb + b, 0))
        gic_spec = pl.BlockSpec((None, tm, g3), lambda r, d, b: (d, b, 0))

    if ndir == 2:
        wnext_spec = pl.BlockSpec((None, hd, g3), lambda r, d, b: (1 - d, 0, 0))
    else:
        wnext_spec = pl.BlockSpec((None, hd, g3), lambda r, d, b: (0, 0, 0))
    g0_spec = pl.BlockSpec((1, g3), lambda r, d, b: (0, 0))
    whh_spec = pl.BlockSpec((None, hd, g3), lambda r, d, b: (d, 0, 0))
    bhh_spec = pl.BlockSpec((None, 1, g3), lambda r, d, b: (d, 0, 0))
    gam_spec = pl.BlockSpec((1, hd), lambda r, d, b: (0, 0))
    bet_spec = pl.BlockSpec((1, hd), lambda r, d, b: (0, 0))
    out_spec = pl.BlockSpec((n_pad, hd), lambda r, d, b: (0, 0))

    kernel = functools.partial(
        multi_gcn_kernel, layernorm=layernorm, eps=1e-5,
        ndir=ndir, tm=tm, resident=resident)

    out = pl.pallas_call(
        kernel,
        out_shape=jax.ShapeDtypeStruct((n_pad, hd), jnp.float32),
        grid=(num_rounds, ndir, nb),
        in_specs=[adj_spec, gic_spec, wnext_spec, g0_spec, whh_spec, bhh_spec,
                  gam_spec, bet_spec],
        out_specs=out_spec,
        scratch_shapes=[pltpu.VMEM((2 * n_pad, g3), jnp.bfloat16)],
        compiler_params=pltpu.CompilerParams(
            # Sequential recurrence: the state / g scratch are carried in VMEM
            # across grid steps, so no axis may be megacore-split.
            dimension_semantics=("arbitrary", "arbitrary", "arbitrary"),
            vmem_limit_bytes=budget),
    )(adj_arr, gic_arr, folded["w_comb"], g0, folded["whh_t"], folded["bhh"],
      folded["gamma"], folded["beta"])
    return out[:n]


def reference_forward(x, edge_index, params, num_rounds, enable_reverse,
                      layernorm, eps=1e-5):
    """Pure-JAX f32 replica of the PyTorch module (for validation)."""
    n = x.shape[0]
    hd = params["wa"].shape[0]
    src, dst = edge_index[0], edge_index[1]
    adj = jnp.zeros((n, n), jnp.float32).at[dst, src].add(1.0)
    adj_r = jnp.zeros((n, n), jnp.float32).at[src, dst].add(1.0)

    def gru(msg, h, wih, bih, whh, bhh):
        gi = jnp.concatenate([msg, x], axis=-1) @ wih.T + bih
        gh = h @ whh.T + bhh
        r = jax.nn.sigmoid(gi[:, :hd] + gh[:, :hd])
        z = jax.nn.sigmoid(gi[:, hd:2 * hd] + gh[:, hd:2 * hd])
        nn_ = jnp.tanh(gi[:, 2 * hd:] + r * gh[:, 2 * hd:])
        return (1.0 - z) * nn_ + z * h

    def ln(h):
        mu = h.mean(-1, keepdims=True)
        var = ((h - mu) ** 2).mean(-1, keepdims=True)
        return (h - mu) / jnp.sqrt(var + eps) * params["gamma"] + params["beta"]

    h = jnp.ones((n, hd), jnp.float32)
    for _ in range(num_rounds):
        msg = adj @ (h @ params["wa"].T + params["ba"])
        h = gru(msg, h, params["wih"], params["bih"], params["whh"], params["bhh"])
        if layernorm:
            h = ln(h)
        if enable_reverse:
            msg = adj_r @ (h @ params["wa_r"].T + params["ba_r"])
            h = gru(msg, h, params["wih_r"], params["bih_r"],
                    params["whh_r"], params["bhh_r"])
            if layernorm:
                h = ln(h)
    return h


if __name__ == "__main__":
    key = jax.random.PRNGKey(0)
    N, H, F, E = 96, 32, 16, 256          # num_nodes, dim_hidden, dim_feature, edges
    NUM_ROUNDS = 2
    ENABLE_REVERSE = True
    LAYERNORM = True

    keys = jax.random.split(key, 16)
    x = jax.random.normal(keys[0], (N, F), jnp.float32)
    edge_index = jax.random.randint(keys[1], (2, E), 0, N, dtype=jnp.int32)

    s = 1.0 / math.sqrt(H)

    def u(k, shape):
        return jax.random.uniform(k, shape, jnp.float32, minval=-s, maxval=s)

    params = {
        # AggConv linear (forward / reverse)
        "wa": u(keys[2], (H, H)), "ba": u(keys[3], (H,)),
        "wa_r": u(keys[8], (H, H)), "ba_r": u(keys[9], (H,)),
        # nn.GRU(dim_hidden + dim_feature, dim_hidden) params (forward / reverse)
        "wih": u(keys[4], (3 * H, H + F)), "bih": u(keys[5], (3 * H,)),
        "whh": u(keys[6], (3 * H, H)), "bhh": u(keys[7], (3 * H,)),
        "wih_r": u(keys[10], (3 * H, H + F)), "bih_r": u(keys[11], (3 * H,)),
        "whh_r": u(keys[12], (3 * H, H)), "bhh_r": u(keys[13], (3 * H,)),
        # nn.LayerNorm(dim_hidden) affine params
        "gamma": jnp.ones((H,), jnp.float32),
        "beta": jnp.zeros((H,), jnp.float32),
    }

    # Per-graph / per-model preprocessing is done ONCE, outside the forward path.
    graph = build_graph(edge_index, N, ENABLE_REVERSE, block_rows=32)
    folded = fold_params(params, ENABLE_REVERSE, H)

    ref = reference_forward(x, edge_index, params, NUM_ROUNDS, ENABLE_REVERSE,
                            LAYERNORM)

    # Exercise both the small-graph resident fast path and the streamed path.
    out_res = multi_gcn_encoder(x, graph, folded, num_rounds=NUM_ROUNDS,
                                enable_reverse=ENABLE_REVERSE,
                                layernorm=LAYERNORM, force_streamed=False)
    out_str = multi_gcn_encoder(x, graph, folded, num_rounds=NUM_ROUNDS,
                                enable_reverse=ENABLE_REVERSE,
                                layernorm=LAYERNORM, force_streamed=True)
    out_res = jax.block_until_ready(out_res)
    out_str = jax.block_until_ready(out_str)

    assert out_res.shape == (N, H) and out_str.shape == (N, H)
    assert bool(jnp.all(jnp.isfinite(out_res)))
    assert bool(jnp.all(jnp.isfinite(out_str)))

    err_res = float(jnp.max(jnp.abs(out_res - ref)))
    err_str = float(jnp.max(jnp.abs(out_str - ref)))
    assert err_res < 5e-2, f"resident path vs reference max abs err {err_res}"
    assert err_str < 5e-2, f"streamed path vs reference max abs err {err_str}"
    print("KERNEL_OK")
</pallas_src>

<mosaic_0001>
module attributes {stable_mosaic.version = 11 : i64} {
  func.func @multi_gcn_kernel(%arg0: i32, %arg1: i32, %arg2: i32, %arg3: memref<192x96xbf16, #tpu.memory_space<vmem>>, %arg4: memref<192x96xf32, #tpu.memory_space<vmem>>, %arg5: memref<1x32x96xf32, #tpu.memory_space<vmem>>, %arg6: memref<1x96xf32, #tpu.memory_space<vmem>>, %arg7: memref<1x32x96xf32, #tpu.memory_space<vmem>>, %arg8: memref<1x1x96xf32, #tpu.memory_space<vmem>>, %arg9: memref<1x32xf32, #tpu.memory_space<vmem>>, %arg10: memref<1x32xf32, #tpu.memory_space<vmem>>, %arg11: memref<96x32xf32, #tpu.memory_space<vmem>>, %arg12: memref<192x96xbf16, #tpu.memory_space<vmem>>) attributes {dimension_semantics = [#tpu.dimension_semantics<arbitrary>, #tpu.dimension_semantics<arbitrary>, #tpu.dimension_semantics<arbitrary>], iteration_bounds = array<i64: 2, 2, 3>, scalar_prefetch = 0 : i64, scratch_operands = 1 : i64, tpu.core_type = #tpu.core_type<tc>, window_params = [{pipeline_mode = #tpu.pipeline_mode<synchronous>, transform_indices = @transform_0, window_bounds = array<i64: 192, 96>}, {pipeline_mode = #tpu.pipeline_mode<synchronous>, transform_indices = @transform_1, window_bounds = array<i64: 192, 96>}, {transform_indices = @transform_2, window_bounds = array<i64: 1, 32, 96>}, {pipeline_mode = #tpu.pipeline_mode<synchronous>, transform_indices = @transform_3, window_bounds = array<i64: 1, 96>}, {transform_indices = @transform_4, window_bounds = array<i64: 1, 32, 96>}, {transform_indices = @transform_5, window_bounds = array<i64: 1, 1, 96>}, {pipeline_mode = #tpu.pipeline_mode<synchronous>, transform_indices = @transform_6, window_bounds = array<i64: 1, 32>}, {pipeline_mode = #tpu.pipeline_mode<synchronous>, transform_indices = @transform_7, window_bounds = array<i64: 1, 32>}, {pipeline_mode = #tpu.pipeline_mode<synchronous>, transform_indices = @transform_8, window_bounds = array<i64: 96, 32>}]} {
    %c32_i32 = arith.constant 32 : i32
    %0 = arith.muli %arg2, %c32_i32 : i32
    %1 = tpu.assume_multiple %0, 32 : i32
    %c2_i32 = arith.constant 2 : i32
    %2 = arith.muli %arg0, %c2_i32 : i32
    %3 = arith.addi %2, %arg1 : i32
    %c2_i32_0 = arith.constant 2 : i32
    %c0_i32 = arith.constant 0 : i32
    %4 = arith.cmpi eq, %c2_i32_0, %c0_i32 : i32
    %c1_i32 = arith.constant 1 : i32
    %5 = arith.select %4, %c1_i32, %c2_i32_0 : i32
    %6 = arith.remsi %3, %5 : i32
    %c0_i32_1 = arith.constant 0 : i32
    %7 = arith.cmpi ne, %6, %c0_i32_1 : i32
    %c0_i32_2 = arith.constant 0 : i32
    %8 = arith.cmpi slt, %6, %c0_i32_2 : i32
    %c0_i32_3 = arith.constant 0 : i32
    %9 = arith.cmpi slt, %5, %c0_i32_3 : i32
    %10 = arith.xori %8, %9 : i1
    %11 = arith.andi %10, %7 : i1
    %12 = arith.addi %6, %5 : i32
    %13 = arith.select %11, %12, %6 : i32
    %c1_i32_4 = arith.constant 1 : i32
    %14 = arith.subi %c1_i32_4, %13 : i32
    %c0_i32_5 = arith.constant 0 : i32
    %15 = arith.cmpi eq, %arg0, %c0_i32_5 : i32
    %c0_i32_6 = arith.constant 0 : i32
    %16 = arith.cmpi eq, %arg1, %c0_i32_6 : i32
    %17 = arith.andi %15, %16 : i1
    %c0_i32_7 = arith.constant 0 : i32
    %18 = arith.cmpi eq, %arg2, %c0_i32_7 : i32
    %19 = arith.andi %17, %18 : i1
    %20 = arith.extui %19 : i1 to i32
    %c0_i32_8 = arith.constant 0 : i32
    %21 = arith.cmpi ne, %20, %c0_i32_8 : i32
    scf.if %21 {
      %cst_40 = arith.constant 1.000000e+00 : f32
      %106 = vector.broadcast %cst_40 : f32 to vector<96x32xf32>
      %c0_41 = arith.constant 0 : index
      %c0_42 = arith.constant 0 : index
      %107 = vector.load %arg11[%c0_41, %c0_42] : memref<96x32xf32, #tpu.memory_space<vmem>>, vector<96x32xf32>
      tpu.vector_store %arg11[%c0_41, %c0_42], %106 {strides = array<i32>} : memref<96x32xf32, #tpu.memory_space<vmem>>, vector<96x32xf32>,
      %c0_43 = arith.constant 0 : index
      %c0_44 = arith.constant 0 : index
      %108 = vector.load %arg6[%c0_43, %c0_44] : memref<1x96xf32, #tpu.memory_space<vmem>>, vector<1x96xf32>
      %109 = vector.shape_cast %108 : vector<1x96xf32> to vector<1x96xf32>
      %110 = vector.broadcast %109 : vector<1x96xf32> to vector<96x96xf32>
      %111 = arith.truncf %110 : vector<96x96xf32> to vector<96x96xbf16>
      %c0_45 = arith.constant 0 : index
      %c0_46 = arith.constant 0 : index
      %112 = vector.load %arg12[%c0_45, %c0_46] : memref<192x96xbf16, #tpu.memory_space<vmem>>, vector<96x96xbf16>
      tpu.vector_store %arg12[%c0_45, %c0_46], %111 {strides = array<i32>} : memref<192x96xbf16, #tpu.memory_space<vmem>>, vector<96x96xbf16>,
    } else {
    }
    %c96_i32 = arith.constant 96 : i32
    %22 = arith.muli %arg1, %c96_i32 : i32
    %c32_i32_9 = arith.constant 32 : i32
    %23 = arith.muli %arg2, %c32_i32_9 : i32
    %24 = arith.addi %22, %23 : i32
    %25 = tpu.assume_multiple %24, 32 : i32
    %26 = arith.index_cast %25 : i32 to index
    %c0 = arith.constant 0 : index
    %27 = vector.load %arg3[%26, %c0] : memref<192x96xbf16, #tpu.memory_space<vmem>>, vector<32x96xbf16>
    %28 = arith.index_cast %25 : i32 to index
    %c0_10 = arith.constant 0 : index
    %29 = vector.load %arg4[%28, %c0_10] : memref<192x96xf32, #tpu.memory_space<vmem>>, vector<32x96xf32>
    %c96_i32_11 = arith.constant 96 : i32
    %30 = arith.muli %13, %c96_i32_11 : i32
    %31 = tpu.assume_multiple %30, 32 : i32
    %32 = arith.index_cast %31 : i32 to index
    %c0_12 = arith.constant 0 : index
    %33 = vector.load %arg12[%32, %c0_12] : memref<192x96xbf16, #tpu.memory_space<vmem>>, vector<96x96xbf16>
    %cst = arith.constant dense<0.000000e+00> : vector<32x96xf32>
    %34 = tpu.matmul %27, %33, %cst {dimension_numbers = #tpu.dot_dimension_numbers<[1], [0], [0], [1], [0, 0, 1, 1], [], []>} : vector<32x96xbf16>, vector<96x96xbf16>, vector<32x96xf32> -> vector<32x96xf32>
    %35 = arith.addf %34, %29 : vector<32x96xf32>
    %36 = arith.index_cast %1 : i32 to index
    %c0_13 = arith.constant 0 : index
    %37 = vector.load %arg11[%36, %c0_13] : memref<96x32xf32, #tpu.memory_space<vmem>>, vector<32x32xf32>
    %c0_14 = arith.constant 0 : index
    %c0_15 = arith.constant 0 : index
    %c0_16 = arith.constant 0 : index
    %38 = vector.load %arg7[%c0_14, %c0_15, %c0_16] : memref<1x32x96xf32, #tpu.memory_space<vmem>>, vector<1x32x96xf32>
    %39 = vector.shape_cast %38 : vector<1x32x96xf32> to vector<32x96xf32>
    %cst_17 = arith.constant dense<0.000000e+00> : vector<32x96xf32>
    %40 = tpu.matmul %37, %39, %cst_17 {dimension_numbers = #tpu.dot_dimension_numbers<[1], [0], [0], [1], [0, 0, 1, 1], [], []>} : vector<32x32xf32>, vector<32x96xf32>, vector<32x96xf32> -> vector<32x96xf32>
    %c0_18 = arith.constant 0 : index
    %c0_19 = arith.constant 0 : index
    %c0_20 = arith.constant 0 : index
    %41 = vector.load %arg8[%c0_18, %c0_19, %c0_20] : memref<1x1x96xf32, #tpu.memory_space<vmem>>, vector<1x1x96xf32>
    %42 = vector.shape_cast %41 : vector<1x1x96xf32> to vector<1x96xf32>
    %43 = vector.broadcast %42 : vector<1x96xf32> to vector<32x96xf32>
    %44 = arith.addf %40, %43 : vector<32x96xf32>
    %45 = vector.extract_strided_slice %35 {offsets = [0, 0], sizes = [32, 32], strides = [1, 1]} : vector<32x96xf32> to vector<32x32xf32>
    %46 = vector.extract_strided_slice %44 {offsets = [0, 0], sizes = [32, 32], strides = [1, 1]} : vector<32x96xf32> to vector<32x32xf32>
    %47 = arith.addf %45, %46 : vector<32x32xf32>
    %48 = arith.negf %47 : vector<32x32xf32>
    %49 = math.exp %48 : vector<32x32xf32>
    %cst_21 = arith.constant 1.000000e+00 : f32
    %50 = vector.broadcast %cst_21 : f32 to vector<32x32xf32>
    %51 = arith.addf %50, %49 : vector<32x32xf32>
    %52 = arith.divf %50, %51 : vector<32x32xf32>
    %53 = vector.extract_strided_slice %35 {offsets = [0, 32], sizes = [32, 32], strides = [1, 1]} : vector<32x96xf32> to vector<32x32xf32>
    %54 = vector.extract_strided_slice %44 {offsets = [0, 32], sizes = [32, 32], strides = [1, 1]} : vector<32x96xf32> to vector<32x32xf32>
    %55 = arith.addf %53, %54 : vector<32x32xf32>
    %56 = arith.negf %55 : vector<32x32xf32>
    %57 = math.exp %56 : vector<32x32xf32>
    %cst_22 = arith.constant 1.000000e+00 : f32
    %58 = vector.broadcast %cst_22 : f32 to vector<32x32xf32>
    %59 = arith.addf %58, %57 : vector<32x32xf32>
    %60 = arith.divf %58, %59 : vector<32x32xf32>
    %61 = vector.extract_strided_slice %35 {offsets = [0, 64], sizes = [32, 32], strides = [1, 1]} : vector<32x96xf32> to vector<32x32xf32>
    %62 = vector.extract_strided_slice %44 {offsets = [0, 64], sizes = [32, 32], strides = [1, 1]} : vector<32x96xf32> to vector<32x32xf32>
    %63 = arith.mulf %52, %62 : vector<32x32xf32>
    %64 = arith.addf %61, %63 : vector<32x32xf32>
    %65 = math.tanh %64 : vector<32x32xf32>
    %cst_23 = arith.constant 1.000000e+00 : f32
    %66 = vector.broadcast %cst_23 : f32 to vector<32x32xf32>
    %67 = arith.subf %66, %60 : vector<32x32xf32>
    %68 = arith.mulf %67, %65 : vector<32x32xf32>
    %69 = arith.mulf %60, %37 : vector<32x32xf32>
    %70 = arith.addf %68, %69 : vector<32x32xf32>
    %cst_24 = arith.constant dense<0.000000e+00> : vector<32xf32>
    %71 = vector.multi_reduction <add>, %70, %cst_24 [1] : vector<32x32xf32> to vector<32xf32>
    %72 = vector.shape_cast %71 : vector<32xf32> to vector<32x1xf32>
    %cst_25 = arith.constant 3.200000e+01 : f32
    %73 = vector.broadcast %cst_25 : f32 to vector<32x1xf32>
    %74 = arith.divf %72, %73 : vector<32x1xf32>
    %75 = vector.broadcast %74 : vector<32x1xf32> to vector<32x32xf32>
    %76 = arith.subf %70, %75 : vector<32x32xf32>
    %77 = arith.mulf %76, %76 : vector<32x32xf32>
    %cst_26 = arith.constant dense<0.000000e+00> : vector<32xf32>
    %78 = vector.multi_reduction <add>, %77, %cst_26 [1] : vector<32x32xf32> to vector<32xf32>
    %79 = vector.shape_cast %78 : vector<32xf32> to vector<32x1xf32>
    %cst_27 = arith.constant 3.200000e+01 : f32
    %80 = vector.broadcast %cst_27 : f32 to vector<32x1xf32>
    %81 = arith.divf %79, %80 : vector<32x1xf32>
    %82 = vector.broadcast %74 : vector<32x1xf32> to vector<32x32xf32>
    %83 = arith.subf %70, %82 : vector<32x32xf32>
    %cst_28 = arith.constant 9.99999974E-6 : f32
    %84 = vector.broadcast %cst_28 : f32 to vector<32x1xf32>
    %85 = arith.addf %81, %84 : vector<32x1xf32>
    %86 = math.rsqrt %85 : vector<32x1xf32>
    %87 = vector.broadcast %86 : vector<32x1xf32> to vector<32x32xf32>
    %88 = arith.mulf %83, %87 : vector<32x32xf32>
    %c0_29 = arith.constant 0 : index
    %c0_30 = arith.constant 0 : index
    %89 = vector.load %arg9[%c0_29, %c0_30] : memref<1x32xf32, #tpu.memory_space<vmem>>, vector<1x32xf32>
    %90 = vector.broadcast %89 : vector<1x32xf32> to vector<32x32xf32>
    %91 = arith.mulf %88, %90 : vector<32x32xf32>
    %c0_31 = arith.constant 0 : index
    %c0_32 = arith.constant 0 : index
    %92 = vector.load %arg10[%c0_31, %c0_32] : memref<1x32xf32, #tpu.memory_space<vmem>>, vector<1x32xf32>
    %93 = vector.broadcast %92 : vector<1x32xf32> to vector<32x32xf32>
    %94 = arith.addf %91, %93 : vector<32x32xf32>
    %95 = arith.index_cast %1 : i32 to index
    %c0_33 = arith.constant 0 : index
    %96 = vector.load %arg11[%95, %c0_33] : memref<96x32xf32, #tpu.memory_space<vmem>>, vector<32x32xf32>
    tpu.vector_store %arg11[%95, %c0_33], %94 {strides = array<i32>} : memref<96x32xf32, #tpu.memory_space<vmem>>, vector<32x32xf32>,
    %c96_i32_34 = arith.constant 96 : i32
    %97 = arith.muli %14, %c96_i32_34 : i32
    %98 = arith.addi %97, %1 : i32
    %99 = tpu.assume_multiple %98, 32 : i32
    %c0_35 = arith.constant 0 : index
    %c0_36 = arith.constant 0 : index
    %c0_37 = arith.constant 0 : index
    %100 = vector.load %arg5[%c0_35, %c0_36, %c0_37] : memref<1x32x96xf32, #tpu.memory_space<vmem>>, vector<1x32x96xf32>
    %101 = vector.shape_cast %100 : vector<1x32x96xf32> to vector<32x96xf32>
    %cst_38 = arith.constant dense<0.000000e+00> : vector<32x96xf32>
    %102 = tpu.matmul %94, %101, %cst_38 {dimension_numbers = #tpu.dot_dimension_numbers<[1], [0], [0], [1], [0, 0, 1, 1], [], []>} : vector<32x32xf32>, vector<32x96xf32>, vector<32x96xf32> -> vector<32x96xf32>
    %103 = arith.truncf %102 : vector<32x96xf32> to vector<32x96xbf16>
    %104 = arith.index_cast %99 : i32 to index
    %c0_39 = arith.constant 0 : index
    %105 = vector.load %arg12[%104, %c0_39] : memref<192x96xbf16, #tpu.memory_space<vmem>>, vector<32x96xbf16>
    tpu.vector_store %arg12[%104, %c0_39], %103 {strides = array<i32>} : memref<192x96xbf16, #tpu.memory_space<vmem>>, vector<32x96xbf16>,
    return
  }
  func.func @transform_0(%arg0: i32, %arg1: i32, %arg2: i32) -> (i32, i32) {
    %c0_i32 = arith.constant 0 : i32
    %c0_i32_0 = arith.constant 0 : i32
    %c0_i32_1 = arith.constant 0 : i32
    return %c0_i32, %c0_i32_0 : i32, i32
  }
  func.func @transform_1(%arg0: i32, %arg1: i32, %arg2: i32) -> (i32, i32) {
    %c0_i32 = arith.constant 0 : i32
    %c0_i32_0 = arith.constant 0 : i32
    %c0_i32_1 = arith.constant 0 : i32
    return %c0_i32, %c0_i32_0 : i32, i32
  }
  func.func @transform_2(%arg0: i32, %arg1: i32, %arg2: i32) -> (i32, i32, i32) {
    %c1_i32 = arith.constant 1 : i32
    %0 = arith.subi %c1_i32, %arg1 : i32
    %c0_i32 = arith.constant 0 : i32
    %c0_i32_0 = arith.constant 0 : i32
    %c0_i32_1 = arith.constant 0 : i32
    return %0, %c0_i32, %c0_i32_0 : i32, i32, i32
  }
  func.func @transform_3(%arg0: i32, %arg1: i32, %arg2: i32) -> (i32, i32) {
    %c0_i32 = arith.constant 0 : i32
    %c0_i32_0 = arith.constant 0 : i32
    %c0_i32_1 = arith.constant 0 : i32
    return %c0_i32, %c0_i32_0 : i32, i32
  }
  func.func @transform_4(%arg0: i32, %arg1: i32, %arg2: i32) -> (i32, i32, i32) {
    %c0_i32 = arith.constant 0 : i32
    %c0_i32_0 = arith.constant 0 : i32
    %c0_i32_1 = arith.constant 0 : i32
    return %arg1, %c0_i32, %c0_i32_0 : i32, i32, i32
  }
  func.func @transform_5(%arg0: i32, %arg1: i32, %arg2: i32) -> (i32, i32, i32) {
    %c0_i32 = arith.constant 0 : i32
    %c0_i32_0 = arith.constant 0 : i32
    %c0_i32_1 = arith.constant 0 : i32
    return %arg1, %c0_i32, %c0_i32_0 : i32, i32, i32
  }
  func.func @transform_6(%arg0: i32, %arg1: i32, %arg2: i32) -> (i32, i32) {
    %c0_i32 = arith.constant 0 : i32
    %c0_i32_0 = arith.constant 0 : i32
    %c0_i32_1 = arith.constant 0 : i32
    return %c0_i32, %c0_i32_0 : i32, i32
  }
  func.func @transform_7(%arg0: i32, %arg1: i32, %arg2: i32) -> (i32, i32) {
    %c0_i32 = arith.constant 0 : i32
    %c0_i32_0 = arith.constant 0 : i32
    %c0_i32_1 = arith.constant 0 : i32
    return %c0_i32, %c0_i32_0 : i32, i32
  }
  func.func @transform_8(%arg0: i32, %arg1: i32, %arg2: i32) -> (i32, i32) {
    %c0_i32 = arith.constant 0 : i32
    %c0_i32_0 = arith.constant 0 : i32
    %c0_i32_1 = arith.constant 0 : i32
    return %c0_i32, %c0_i32_0 : i32, i32
  }
}

</mosaic_0001>

<llo_original>
// kernel: tpu_custom_call.1
$region0: #{tpu_custom_call.1}
  #allocation0 [shape = 'u32[]', space=smem, size = 0x4, offset = 0x4, fixed_abs, tag = 'smem constant byte address 0x4 - core index']
  #allocation1 [shape = 'u32[72,128]{1,0:T(1,128)}', space=vmem, size = 0x9000, scoped, tag = 'internal scratch']
  #allocation2 [shape = 'bf16[192,96]{1,0:T(8,128)(2,1)}', space=vmem, size = 0xc000, scoped, tag = 'scratch operand']
  %s0 = inlined_call_operand.hbm [shape: bf16[192,96], index: 0, kind: input, shape index: {}]
  %s1 = inlined_call_operand.hbm [shape: f32[192,96], index: 1, kind: input, shape index: {}]
  %s2 = inlined_call_operand.hbm [shape: f32[2,32,96], index: 2, kind: input, shape index: {}]
  %s3 = inlined_call_operand.vmem [shape: f32[1,96], index: 3, kind: input, shape index: {}]
  %s4 = inlined_call_operand.hbm [shape: f32[2,32,96], index: 4, kind: input, shape index: {}]
  %s5 = inlined_call_operand.vmem [shape: f32[2,1,96], index: 5, kind: input, shape index: {}]
  %s6 = inlined_call_operand.vmem [shape: f32[1,32], index: 6, kind: input, shape index: {}]
  %s7 = inlined_call_operand.vmem [shape: f32[1,32], index: 7, kind: input, shape index: {}]
  %s8 = inlined_call_operand.vmem [shape: f32[96,32], index: 8, kind: output, shape index: {}]
  %s9 = sld [smem:[#allocation0]]
  $region85: #{tpu_custom_call.1} parent=0
    _
  %s11 = ssub.s32 1, %s9
  %s12 = scalar_select 0, %s11, %s9
  $region1: #{tpu_custom_call.1} parent=0
    #allocation3 [shape = 'u8[49152]{0}', space=vmem, size = 0xc000, scoped, tag = 'input window, operand 0, single buffered']
    #allocation4 [shape = 's32[2]{0}', space=sflag, size = 0x8, scoped, tag = 'scoped memory for tpu_custom_call.1']
    #allocation5 [shape = 'u8[98304]{0}', space=vmem, size = 0x18000, scoped, tag = 'input window, operand 1, single buffered']
    #allocation6 [shape = 's32[1]{0}', space=sflag, size = 0x4, scoped, tag = 'scoped memory for tpu_custom_call.1']
    #allocation7 [shape = 'u8[32768]{0}', space=vmem, size = 0x8000, scoped, tag = 'input window, operand 2']
    #allocation8 [shape = 'u8[32768]{0}', space=vmem, size = 0x8000, scoped, tag = 'input window, operand 4']
    %13 = vsyncpa [#allocation4], 0
    %14 = vsyncpa [#allocation6], 0
    loop: start=0, step=1, limit=14
    $region2: #{tpu_custom_call.1} parent=1 // loop_pre_header
      _
    $region3: #{tpu_custom_call.1} parent=1 // loop_header
      %s16 = sphi 0, %s20
      %p17 = scmp.ge.s32.totalorder %s16, 14
      %s23 = sphi 0, %s42
      %s24 = sphi 0, %s38
      %s25 = sphi 0, %s34
      %s26 = sphi 0, %s23
      %s27 = sphi 0, %s24
      %s28 = sphi 0, %s25
      %s29 = sphi 0, %s26
      %s30 = sphi 0, %s27
      %s31 = sphi 0, %s28
      %s43 = sphi 0, %s43
      %s45 = sphi 0, %s43
      %s46 = sphi 0, %s45
      %s60 = sphi 0, %s46
      %s64 = sphi 0, %s64
      %s66 = sphi 0, %s64
      %s67 = sphi 0, %s66
      %s81 = sphi 0, %s67
      %s89 = sphi 0, %s91
      %s92 = sphi 0, %s89
      %s93 = sphi 0, %s92
      %s109 = sphi 0, %s93
      %s113 = sphi 0, %s113
      %s115 = sphi 0, %s113
      %s116 = sphi 0, %s115
      %s130 = sphi 0, %s116
      %s136 = sphi 0, %s138
      %s139 = sphi 0, %s136
      %s140 = sphi 0, %s139
      %s156 = sphi 0, %s140
      %s162 = sphi 0, %s164
      %s165 = sphi 0, %s162
      %s166 = sphi 0, %s165
      %s182 = sphi 0, %s166
      %s186 = sphi 0, %s186
      %s188 = sphi 0, %s186
      %s189 = sphi 0, %s188
      %s203 = sphi 0, %s189
      %s207 = sphi 0, %s207
      %s209 = sphi 0, %s207
      %s210 = sphi 0, %s209
      %s224 = sphi 0, %s210
      %s228 = sphi 0, %s228
      %s230 = sphi 0, %s228
      %s231 = sphi 0, %s230
      %s245 = sphi 0, %s231
    $region4: #{tpu_custom_call.1} parent=1 // loop_header_branch
      %19 = sbr.rel (%p17) target = $region8
    $region5: #{tpu_custom_call.1} parent=1 // loop_body
      %s21 = ssub.s32 %s16, 1
      %s22 = ssub.s32 %s16, 2
      %s32 = sadd.s32 1, %s25
      %p33 = scmp.ge.s32.totalorder %s32, 3
      %s34 = scalar_select %p33, 0, %s32
      %s35 = sadd.s32 1, %s24
      %s36 = scalar_select %p33, %s35, %s24
      %p37 = scmp.ge.s32.totalorder %s36, 2
      %s38 = scalar_select %p37, 0, %s36
      %s39 = sadd.s32 1, %s23
      %s40 = scalar_select %p37, %s39, %s23
      %p41 = scmp.ge.s32.totalorder %s40, 2
      %s42 = scalar_select %p41, 0, %s40
      %s44 = sadd.s32 %s43, 1
      %p47 = scmp.eq.s32.totalorder %s16, 11
      %p48 = scmp.ne.s32.totalorder %s43, %s45
      %p49 = scmp.eq.s32.totalorder %s16, 0
      %p50 = por %p48, %p49
      %p51 = scmp.ne.s32.totalorder %s43, %s45
      %p52 = scmp.eq.s32.totalorder %s21, 11
      %p53 = por %p51, %p52
      %p54 = scmp.ne.s32.totalorder %s45, %s46
      %p55 = scmp.eq.s32.totalorder %s21, 0
      %p56 = por %p54, %p55
      %p57 = scmp.ne.s32.totalorder %s45, %s46
      %p58 = scmp.eq.s32.totalorder %s22, 11
      %p59 = por %p57, %p58
      %p61 = scmp.ne.s32.totalorder %s46, %s60
      %p62 = scmp.eq.s32.totalorder %s22, 0
      %p63 = por %p61, %p62
      %s65 = sadd.s32 %s64, 1
      %p68 = scmp.eq.s32.totalorder %s16, 11
      %p69 = scmp.ne.s32.totalorder %s64, %s66
      %p70 = scmp.eq.s32.totalorder %s16, 0
      %p71 = por %p69, %p70
      %p72 = scmp.ne.s32.totalorder %s64, %s66
      %p73 = scmp.eq.s32.totalorder %s21, 11
      %p74 = por %p72, %p73
      %p75 = scmp.ne.s32.totalorder %s66, %s67
      %p76 = scmp.eq.s32.totalorder %s21, 0
      %p77 = por %p75, %p76
      %p78 = scmp.ne.s32.totalorder %s66, %s67
      %p79 = scmp.eq.s32.totalorder %s22, 11
      %p80 = por %p78, %p79
      %p82 = scmp.ne.s32.totalorder %s67, %s81
      %p83 = scmp.eq.s32.totalorder %s22, 0
      %p84 = por %p82, %p83
      %s85 = ssub.s32 1, %s24
      %s86 = ssub.s32 1, %s38
      %s87 = ssub.s32 %s85, %s86
      %p88 = scmp.eq.s32.totalorder %s87, 0
      %s90 = sadd.s32 %s89, 1
      %s91 = scalar_select %p88, %s89, %s90
      %p94 = pneg %p88
      %p95 = scmp.eq.s32.totalorder %s16, 11
      %p96 = por %p94, %p95
      %p97 = scmp.ne.s32.totalorder %s89, %s92
      %p98 = scmp.eq.s32.totalorder %s16, 0
      %p99 = por %p97, %p98
      %p100 = scmp.ne.s32.totalorder %s89, %s92
      %p101 = scmp.eq.s32.totalorder %s21, 11
      %p102 = por %p100, %p101
      %p103 = scmp.ne.s32.totalorder %s92, %s93
      %p104 = scmp.eq.s32.totalorder %s21, 0
      %p105 = por %p103, %p104
      %p106 = scmp.ne.s32.totalorder %s92, %s93
      %p107 = scmp.eq.s32.totalorder %s22, 11
      %p108 = por %p106, %p107
      %p110 = scmp.ne.s32.totalorder %s93, %s109
      %p111 = scmp.eq.s32.totalorder %s22, 0
      %p112 = por %p110, %p111
      %s114 = sadd.s32 %s113, 1
      %p117 = scmp.eq.s32.totalorder %s16, 11
      %p118 = scmp.ne.s32.totalorder %s113, %s115
      %p119 = scmp.eq.s32.totalorder %s16, 0
      %p120 = por %p118, %p119
      %p121 = scmp.ne.s32.totalorder %s113, %s115
      %p122 = scmp.eq.s32.totalorder %s21, 11
      %p123 = por %p121, %p122
      %p124 = scmp.ne.s32.totalorder %s115, %s116
      %p125 = scmp.eq.s32.totalorder %s21, 0
      %p126 = por %p124, %p125
      %p127 = scmp.ne.s32.totalorder %s115, %s116
      %p128 = scmp.eq.s32.totalorder %s22, 11
      %p129 = por %p127, %p128
      %p131 = scmp.ne.s32.totalorder %s116, %s130
      %p132 = scmp.eq.s32.totalorder %s22, 0
      %p133 = por %p131, %p132
      %s134 = ssub.s32 %s24, %s38
      %p135 = scmp.eq.s32.totalorder %s134, 0
      %s137 = sadd.s32 %s136, 1
      %s138 = scalar_select %p135, %s136, %s137
      %p141 = pneg %p135
      %p142 = scmp.eq.s32.totalorder %s16, 11
      %p143 = por %p141, %p142
      %p144 = scmp.ne.s32.totalorder %s136, %s139
      %p145 = scmp.eq.s32.totalorder %s16, 0
      %p146 = por %p144, %p145
      %p147 = scmp.ne.s32.totalorder %s136, %s139
      %p148 = scmp.eq.s32.totalorder %s21, 11
      %p149 = por %p147, %p148
      %p150 = scmp.ne.s32.totalorder %s139, %s140
      %p151 = scmp.eq.s32.totalorder %s21, 0
      %p152 = por %p150, %p151
      %p153 = scmp.ne.s32.totalorder %s139, %s140
      %p154 = scmp.eq.s32.totalorder %s22, 11
      %p155 = por %p153, %p154
      %p157 = scmp.ne.s32.totalorder %s140, %s156
      %p158 = scmp.eq.s32.totalorder %s22, 0
      %p159 = por %p157, %p158
      %s160 = ssub.s32 %s24, %s38
      %p161 = scmp.eq.s32.totalorder %s160, 0
      %s163 = sadd.s32 %s162, 1
      %s164 = scalar_select %p161, %s162, %s163
      %p167 = pneg %p161
      %p168 = scmp.eq.s32.totalorder %s16, 11
      %p169 = por %p167, %p168
      %p170 = scmp.ne.s32.totalorder %s162, %s165
      %p171 = scmp.eq.s32.totalorder %s16, 0
      %p172 = por %p170, %p171
      %p173 = scmp.ne.s32.totalorder %s162, %s165
      %p174 = scmp.eq.s32.totalorder %s21, 11
      %p175 = por %p173, %p174
      %p176 = scmp.ne.s32.totalorder %s165, %s166
      %p177 = scmp.eq.s32.totalorder %s21, 0
      %p178 = por %p176, %p177
      %p179 = scmp.ne.s32.totalorder %s165, %s166
      %p180 = scmp.eq.s32.totalorder %s22, 11
      %p181 = por %p179, %p180
      %p183 = scmp.ne.s32.totalorder %s166, %s182
      %p184 = scmp.eq.s32.totalorder %s22, 0
      %p185 = por %p183, %p184
      %s187 = sadd.s32 %s186, 1
      %p190 = scmp.eq.s32.totalorder %s16, 11
      %p191 = scmp.ne.s32.totalorder %s186, %s188
      %p192 = scmp.eq.s32.totalorder %s16, 0
      %p193 = por %p191, %p192
      %p194 = scmp.ne.s32.totalorder %s186, %s188
      %p195 = scmp.eq.s32.totalorder %s21, 11
      %p196 = por %p194, %p195
      %p197 = scmp.ne.s32.totalorder %s188, %s189
      %p198 = scmp.eq.s32.totalorder %s21, 0
      %p199 = por %p197, %p198
      %p200 = scmp.ne.s32.totalorder %s188, %s189
      %p201 = scmp.eq.s32.totalorder %s22, 11
      %p202 = por %p200, %p201
      %p204 = scmp.ne.s32.totalorder %s189, %s203
      %p205 = scmp.eq.s32.totalorder %s22, 0
      %p206 = por %p204, %p205
      %s208 = sadd.s32 %s207, 1
      %p211 = scmp.eq.s32.totalorder %s16, 11
      %p212 = scmp.ne.s32.totalorder %s207, %s209
      %p213 = scmp.eq.s32.totalorder %s16, 0
      %p214 = por %p212, %p213
      %p215 = scmp.ne.s32.totalorder %s207, %s209
      %p216 = scmp.eq.s32.totalorder %s21, 11
      %p217 = por %p215, %p216
      %p218 = scmp.ne.s32.totalorder %s209, %s210
      %p219 = scmp.eq.s32.totalorder %s21, 0
      %p220 = por %p218, %p219
      %p221 = scmp.ne.s32.totalorder %s209, %s210
      %p222 = scmp.eq.s32.totalorder %s22, 11
      %p223 = por %p221, %p222
      %p225 = scmp.ne.s32.totalorder %s210, %s224
      %p226 = scmp.eq.s32.totalorder %s22, 0
      %p227 = por %p225, %p226
      %s229 = sadd.s32 %s228, 1
      %p232 = scmp.eq.s32.totalorder %s16, 11
      %p233 = scmp.ne.s32.totalorder %s228, %s230
      %p234 = scmp.eq.s32.totalorder %s16, 0
      %p235 = por %p233, %p234
      %p236 = scmp.ne.s32.totalorder %s228, %s230
      %p237 = scmp.eq.s32.totalorder %s21, 11
      %p238 = por %p236, %p237
      %p239 = scmp.ne.s32.totalorder %s230, %s231
      %p240 = scmp.eq.s32.totalorder %s21, 0
      %p241 = por %p239, %p240
      %p242 = scmp.ne.s32.totalorder %s230, %s231
      %p243 = scmp.eq.s32.totalorder %s22, 11
      %p244 = por %p242, %p243
      %p246 = scmp.ne.s32.totalorder %s231, %s245
      %p247 = scmp.eq.s32.totalorder %s22, 0
      %p248 = por %p246, %p247
      %p249 = scmp.le.s32.totalorder 1, %s16
      %p250 = scmp.lt.s32.totalorder %s16, 13
      %p251 = pnand %p249, %p250
      %p252 = pneg %p251
      // Predicated region
      $region9: #{tpu_custom_call.1} parent=5 // pred_check
        _
      $region10: #{tpu_custom_call.1} parent=5 // pred_check_branch
        %254 = sbr.rel (%p251) target = $region12
      $region11: #{tpu_custom_call.1} parent=5 // pred_region
        %s255 = ssub.s32 %s16, 1
        // Predicated region
        $region13: #{tpu_custom_call.1} parent=11 // pred_check
          %p256 = pneg %p56
        $region14: #{tpu_custom_call.1} parent=11 // pred_check_branch
          %258 = sbr.rel (%p256) target = $region16
        $region15: #{tpu_custom_call.1} parent=11 // pred_region
          %260 = vsyncadd [#allocation4], 0
          %s261 = sshll.u32 %s0, 4
          %s262 = int_to_ptr.hbm [resolvable:$true] %s261
          %s263 = sshll.u32 [#allocation3], 4
          %s264 = int_to_ptr.vmem [resolvable:$true] %s263
          %269 = dma.hbm_to_vmem [thread:$0]  %s262, 1536, %s264, [#allocation4], 64, 64, 4
        $region16: #{tpu_custom_call.1} parent=11 // pred_fallthru
          _
        // Predicated region
        $region17: #{tpu_custom_call.1} parent=11 // pred_check
          %p270 = pneg %p77
        $region18: #{tpu_custom_call.1} parent=11 // pred_check_branch
          %272 = sbr.rel (%p270) target = $region20
        $region19: #{tpu_custom_call.1} parent=11 // pred_region
          %274 = vsyncadd [#allocation6], 0
          %s275 = sshll.u32 %s1, 4
          %s276 = int_to_ptr.hbm [resolvable:$true] %s275
          %s277 = sshll.u32 [#allocation5], 4
          %s278 = int_to_ptr.vmem [resolvable:$true] %s277
          %283 = dma.hbm_to_vmem [thread:$0]  %s276, 3072, %s278, [#allocation6], 128, 128, 8
        $region20: #{tpu_custom_call.1} parent=11 // pred_fallthru
          _
        // Predicated region
        $region21: #{tpu_custom_call.1} parent=11 // pred_check
          %p284 = pneg %p126
        $region22: #{tpu_custom_call.1} parent=11 // pred_check_branch
          %286 = sbr.rel (%p284) target = $region24
        $region23: #{tpu_custom_call.1} parent=11 // pred_region
          _
        $region24: #{tpu_custom_call.1} parent=11 // pred_fallthru
          _
        // Predicated region
        $region25: #{tpu_custom_call.1} parent=11 // pred_check
          %p287 = pneg %p199
        $region26: #{tpu_custom_call.1} parent=11 // pred_check_branch
          %289 = sbr.rel (%p287) target = $region28
        $region27: #{tpu_custom_call.1} parent=11 // pred_region
          _
        $region28: #{tpu_custom_call.1} parent=11 // pred_fallthru
          _
        // Predicated region
        $region29: #{tpu_custom_call.1} parent=11 // pred_check
          %p290 = pneg %p220
        $region30: #{tpu_custom_call.1} parent=11 // pred_check_branch
          %292 = sbr.rel (%p290) target = $region32
        $region31: #{tpu_custom_call.1} parent=11 // pred_region
          _
        $region32: #{tpu_custom_call.1} parent=11 // pred_fallthru
          _
      $region12: #{tpu_custom_call.1} parent=5 // pred_fallthru
        _
      %p293 = scmp.lt.s32.totalorder %s16, 12
      // Predicated region
      $region33: #{tpu_custom_call.1} parent=5 // pred_check
        %p294 = pneg %p293
      $region34: #{tpu_custom_call.1} parent=5 // pred_check_branch
        %296 = sbr.rel (%p294) target = $region36
      $region35: #{tpu_custom_call.1} parent=5 // pred_region
        // Predicated region
        $region37: #{tpu_custom_call.1} parent=35 // pred_check
          %p297 = pneg %p99
        $region38: #{tpu_custom_call.1} parent=35 // pred_check_branch
          %299 = sbr.rel (%p297) target = $region40
        $region39: #{tpu_custom_call.1} parent=35 // pred_region
          %s300 = sand.u32 %s16, 1
          %s301 = scalar_lea.sflag [#allocation4], %s300
          %s302 = sand.u32 %s89, 1
          %s303 = smul.addr %s302, 32
          %s304 = scalar_lea.vmem [#allocation7], %s303
          %s305 = ssub.s32 1, %s24
          %307 = vsyncadd %s301, 0
          %s308 = smul.addr %s305, 4
          %s309 = smul.addr %s308, 8
          %s310 = scalar_lea.hbm %s2, %s309
          %s311 = sshll.u32 %s310, 4
          %s312 = int_to_ptr.hbm [resolvable:$true] %s311
          %s313 = sshll.u32 %s304, 4
          %s314 = int_to_ptr.vmem [resolvable:$true] %s313
          %319 = dma.hbm_to_vmem [thread:$0]  %s312, 512, %s314, %s301, 128, 128, 8
        $region40: #{tpu_custom_call.1} parent=35 // pred_fallthru
          _
        // Predicated region
        $region41: #{tpu_custom_call.1} parent=35 // pred_check
          %p320 = pneg %p146
        $region42: #{tpu_custom_call.1} parent=35 // pred_check_branch
          %322 = sbr.rel (%p320) target = $region44
        $region43: #{tpu_custom_call.1} parent=35 // pred_region
          %s323 = sand.u32 %s16, 1
          %s324 = scalar_lea.sflag [#allocation4], %s323
          %s325 = sand.u32 %s136, 1
          %s326 = smul.addr %s325, 32
          %s327 = scalar_lea.vmem [#allocation8], %s326
          %329 = vsyncadd %s324, 0
          %s330 = smul.addr %s24, 4
          %s331 = smul.addr %s330, 8
          %s332 = scalar_lea.hbm %s4, %s331
          %s333 = sshll.u32 %s332, 4
          %s334 = int_to_ptr.hbm [resolvable:$true] %s333
          %s335 = sshll.u32 %s327, 4
          %s336 = int_to_ptr.vmem [resolvable:$true] %s335
          %341 = dma.hbm_to_vmem [thread:$0]  %s334, 512, %s336, %s324, 128, 128, 8
        $region44: #{tpu_custom_call.1} parent=35 // pred_fallthru
          _
        // Predicated region
        $region45: #{tpu_custom_call.1} parent=35 // pred_check
          %p342 = pneg %p172
        $region46: #{tpu_custom_call.1} parent=35 // pred_check_branch
          %344 = sbr.rel (%p342) target = $region48
        $region47: #{tpu_custom_call.1} parent=35 // pred_region
          %p345 = scmp.lt.s32.totalorder %s24, 1
          %s346 = scalar_select %p345, %s24, 1
          %s347 = scalar_lea.vmem %s5, %s346
        $region48: #{tpu_custom_call.1} parent=35 // pred_fallthru
          _
      $region36: #{tpu_custom_call.1} parent=5 // pred_fallthru
        _
      %p348 = scmp.le.s32.totalorder 1, %s16
      %p349 = scmp.lt.s32.totalorder %s16, 13
      %p350 = pnand %p348, %p349
      %p351 = pneg %p350
      // Predicated region
      $region49: #{tpu_custom_call.1} parent=5 // pred_check
        _
      $region50: #{tpu_custom_call.1} parent=5 // pred_check_branch
        %353 = sbr.rel (%p350) target = $region52
      $region51: #{tpu_custom_call.1} parent=5 // pred_region
        %s354 = ssub.s32 %s16, 1
        // Predicated region
        $region53: #{tpu_custom_call.1} parent=51 // pred_check
          %p355 = pneg %p56
        $region54: #{tpu_custom_call.1} parent=51 // pred_check_branch
          %357 = sbr.rel (%p355) target = $region56
        $region55: #{tpu_custom_call.1} parent=51 // pred_region
          %359 = dma.done [#allocation4], 1536
        $region56: #{tpu_custom_call.1} parent=51 // pred_fallthru
          _
        // Predicated region
        $region57: #{tpu_custom_call.1} parent=51 // pred_check
          %p360 = pneg %p77
        $region58: #{tpu_custom_call.1} parent=51 // pred_check_branch
          %362 = sbr.rel (%p360) target = $region60
        $region59: #{tpu_custom_call.1} parent=51 // pred_region
          %364 = dma.done [#allocation6], 3072
        $region60: #{tpu_custom_call.1} parent=51 // pred_fallthru
          _
        %s365 = sand.u32 %s21, 1
        %s366 = scalar_lea.sflag [#allocation4], %s365
        %s367 = sand.u32 %s92, 1
        %s368 = smul.addr %s367, 32
        %s369 = scalar_lea.vmem [#allocation7], %s368
        // Predicated region
        $region61: #{tpu_custom_call.1} parent=51 // pred_check
          %p370 = pneg %p105
        $region62: #{tpu_custom_call.1} parent=51 // pred_check_branch
          %372 = sbr.rel (%p370) target = $region64
        $region63: #{tpu_custom_call.1} parent=51 // pred_region
          %374 = dma.done %s366, 512
        $region64: #{tpu_custom_call.1} parent=51 // pred_fallthru
          _
        %s375 = sand.u32 %s21, 1
        %s376 = scalar_lea.sflag [#allocation4], %s375
        %s377 = sand.u32 %s139, 1
        %s378 = smul.addr %s377, 32
        %s379 = scalar_lea.vmem [#allocation8], %s378
        // Predicated region
        $region65: #{tpu_custom_call.1} parent=51 // pred_check
          %p380 = pneg %p152
        $region66: #{tpu_custom_call.1} parent=51 // pred_check_branch
          %382 = sbr.rel (%p380) target = $region68
        $region67: #{tpu_custom_call.1} parent=51 // pred_region
          %384 = dma.done %s376, 512
        $region68: #{tpu_custom_call.1} parent=51 // pred_fallthru
          _
        %p385 = pneg %p56
        %p386 = pneg %p53
        %p387 = pneg %p77
        %p388 = pneg %p74
        %s389 = sand.u32 %s21, 1
        %s390 = scalar_lea.sflag [#allocation4], %s389
        %s391 = sand.u32 %s92, 1
        %s392 = smul.addr %s391, 32
        %s393 = scalar_lea.vmem [#allocation7], %s392
        %p394 = pneg %p105
        %p395 = pneg %p102
        %p396 = pneg %p126
        %p397 = pneg %p123
        %s398 = sand.u32 %s21, 1
        %s399 = scalar_lea.sflag [#allocation4], %s398
        %s400 = sand.u32 %s139, 1
        %s401 = smul.addr %s400, 32
        %s402 = scalar_lea.vmem [#allocation8], %s401
        %p403 = pneg %p152
        %p404 = pneg %p149
        %p405 = scmp.lt.s32.totalorder %s27, 1
        %s406 = scalar_select %p405, %s27, 1
        %s407 = scalar_lea.vmem %s5, %s406
        %p408 = pneg %p178
        %p409 = pneg %p175
        %p410 = pneg %p199
        %p411 = pneg %p196
        %p412 = pneg %p220
        %p413 = pneg %p217
        %p414 = pneg %p241
        %p415 = pneg %p238
        %s416 = ssub.s32 1, %s27
        %p417 = scmp.lt.s32.totalorder %s27, 1
        %s418 = scalar_select %p417, %s27, 1
        %s419 = scalar_lea.vmem %s5, %s418
        %s421 = smul.u32 %s28, 32
        %s422 = smul.u32 %s26, 2
        %s423 = sadd.s32 %s422, %s27
        %p424 = scmp.lt.s32.totalorder %s423, 0
        %s425 = ssub.s32 0, %s423
        %s426 = scalar_select %p424, %s425, %s423
        %s427 = sand.u32 %s426, 1
        %s428 = ssub.s32 0, %s427
        %s429 = scalar_select %p424, %s428, %s427
        %p430 = scmp.ne.s32.totalorder %s429, 0
        %p431 = scmp.lt.s32.totalorder %s429, 0
        %p432 = pnand %p431, %p430
        %p433 = pneg %p432
        %s434 = sadd.s32 %s429, 2
        %s435 = scalar_select %p433, %s434, %s429
        %s436 = ssub.s32 1, %s435
        %p437 = scmp.eq.s32.totalorder %s26, 0
        %p438 = scmp.eq.s32.totalorder %s27, 0
        %p439 = pnand %p437, %p438
        %p440 = pneg %p439
        %p441 = scmp.eq.s32.totalorder %s28, 0
        %p442 = pnand %p440, %p441
        %p443 = pneg %p442
        // Predicated region
        $region69: #{tpu_custom_call.1} parent=51 // pred_check
          _
        $region70: #{tpu_custom_call.1} parent=51 // pred_check_branch
          %445 = sbr.rel (%p442) target = $region72
        $region71: #{tpu_custom_call.1} parent=51 // pred_region
          %vm446 = vcmask 261120
          %447 = vst.msk [vmem:[%s8] sm:$0xff] %vm446, 1.0
          %448 = vst.msk [vmem:[%s8 + $0x8] sm:$0xff] %vm446, 1.0
          %449 = vst.msk [vmem:[%s8 + $0x10] sm:$0xff] %vm446, 1.0
          %450 = vst.msk [vmem:[%s8 + $0x18] sm:$0xff] %vm446, 1.0
          %451 = vst.msk [vmem:[%s8 + $0x20] sm:$0xff] %vm446, 1.0
          %452 = vst.msk [vmem:[%s8 + $0x28] sm:$0xff] %vm446, 1.0
          %453 = vst.msk [vmem:[%s8 + $0x30] sm:$0xff] %vm446, 1.0
          %454 = vst.msk [vmem:[%s8 + $0x38] sm:$0xff] %vm446, 1.0
          %455 = vst.msk [vmem:[%s8 + $0x40] sm:$0xff] %vm446, 1.0
          %456 = vst.msk [vmem:[%s8 + $0x48] sm:$0xff] %vm446, 1.0
          %457 = vst.msk [vmem:[%s8 + $0x50] sm:$0xff] %vm446, 1.0
          %458 = vst.msk [vmem:[%s8 + $0x58] sm:$0xff] %vm446, 1.0
          %v459 = vld [vmem:[%s3] sm:$0x1]
          %v461 = vperm.slane %v459, 0
          %v463 = vpack.c.bf16 %v461, %v461
          %vm464 = vcmask 781312
          %465 = vst.msk [vmem:[#allocation2] sm:$0xf] %vm464, %v463
          %466 = vst.msk [vmem:[#allocation2 + $0x4] sm:$0xf] %vm464, %v463
          %467 = vst.msk [vmem:[#allocation2 + $0x8] sm:$0xf] %vm464, %v463
          %468 = vst.msk [vmem:[#allocation2 + $0xc] sm:$0xf] %vm464, %v463
          %469 = vst.msk [vmem:[#allocation2 + $0x10] sm:$0xf] %vm464, %v463
          %470 = vst.msk [vmem:[#allocation2 + $0x14] sm:$0xf] %vm464, %v463
          %471 = vst.msk [vmem:[#allocation2 + $0x18] sm:$0xf] %vm464, %v463
          %472 = vst.msk [vmem:[#allocation2 + $0x1c] sm:$0xf] %vm464, %v463
          %473 = vst.msk [vmem:[#allocation2 + $0x20] sm:$0xf] %vm464, %v463
          %474 = vst.msk [vmem:[#allocation2 + $0x24] sm:$0xf] %vm464, %v463
          %475 = vst.msk [vmem:[#allocation2 + $0x28] sm:$0xf] %vm464, %v463
          %476 = vst.msk [vmem:[#allocation2 + $0x2c] sm:$0xf] %vm464, %v463
        $region72: #{tpu_custom_call.1} parent=51 // pred_fallthru
          _
        %s477 = smul.u32 %s27, 96
        %s478 = sadd.s32 %s477, %s421
        %s479 = sshra.s32 %s478, 3
        %s480 = sand.u32 %s478, 7
        %s481 = smul.addr %s479, 4
        %s482 = scalar_lea.vmem [#allocation3], %s481
        %v483 = vld [vmem:[%s482] sm:$0xf]
        %v484 = vld [vmem:[%s482 + $0x4] sm:$0xf]
        %v485 = vld [vmem:[%s482 + $0x8] sm:$0xf]
        %v486 = vld [vmem:[%s482 + $0xc] sm:$0xf]
        %s487 = scalar_lea.vmem [#allocation5], %s478
        %v488 = vld [vmem:[%s487] sm:$0xff]
        %v489 = vld [vmem:[%s487 + $0x8] sm:$0xff]
        %v490 = vld [vmem:[%s487 + $0x10] sm:$0xff]
        %v491 = vld [vmem:[%s487 + $0x18] sm:$0xff]
        %s492 = smul.u32 %s435, 96
        %s493 = sshra.s32 %s492, 3
        %s494 = sand.u32 %s492, 7
        %s495 = smul.addr %s493, 4
        %s496 = scalar_lea.vmem [#allocation2], %s495
        %v497 = vld [vmem:[%s496] sm:$0xf]
        %v498 = vld [vmem:[%s496 + $0x4] sm:$0xf]
        %v499 = vld [vmem:[%s496 + $0x8] sm:$0xf]
        %v500 = vld [vmem:[%s496 + $0xc] sm:$0xf]
        %v501 = vld [vmem:[%s496 + $0x10] sm:$0xf]
        %v502 = vld [vmem:[%s496 + $0x14] sm:$0xf]
        %v503 = vld [vmem:[%s496 + $0x18] sm:$0xf]
        %v504 = vld [vmem:[%s496 + $0x1c] sm:$0xf]
        %v505 = vld [vmem:[%s496 + $0x20] sm:$0xf]
        %v506 = vld [vmem:[%s496 + $0x24] sm:$0xf]
        %v507 = vld [vmem:[%s496 + $0x28] sm:$0xf]
        %v508 = vld [vmem:[%s496 + $0x2c] sm:$0xf]
        %v513 = vunpack.c.l.b16 %v483
        %v514 = vunpack.c.l.b16 %v484
        %v515 = vunpack.c.l.b16 %v485
        %v516 = vunpack.c.l.b16 %v486
        %v517 = vpack.c.b16 %v514, %v513
        %v518 = vpack.c.b16 %v516, %v515
        %v531 = vunpack.c.l.b16 %v497
        %v532 = vunpack.c.l.b16 %v498
        %v533 = vunpack.c.l.b16 %v499
        %v534 = vunpack.c.l.b16 %v500
        %v535 = vunpack.c.l.b16 %v501
        %v536 = vunpack.c.l.b16 %v502
        %v537 = vunpack.c.l.b16 %v503
        %v538 = vunpack.c.l.b16 %v504
        %v539 = vunpack.c.l.b16 %v505
        %v540 = vunpack.c.l.b16 %v506
        %v541 = vunpack.c.l.b16 %v507
        %v542 = vunpack.c.l.b16 %v508
        %v543 = vpack.c.b16 %v532, %v531
        %v544 = vpack.c.b16 %v534, %v533
        %v545 = vpack.c.b16 %v536, %v535
        %v546 = vpack.c.b16 %v538, %v537
        %v547 = vpack.c.b16 %v540, %v539
        %v548 = vpack.c.b16 %v542, %v541
        %vm555 = vcmask 785408
        %v557 = vsel %vm555, %v517, 0
        %v560 = vsel %vm555, %v518, 0
        %562 = vmatpush.bf16.msra.mxu0 0
        %563 = vmatpush.bf16.msra.mxu0 0
        %564 = vmatpush.bf16.msra.mxu0 %v548
        %565 = vmatpush.bf16.msra.mxu0 %v547
        %566 = vmatpush.bf16.msra.mxu0 %v546
        %567 = vmatpush.bf16.msra.mxu0 %v545
        %568 = vmatpush.bf16.msra.mxu0 %v544
        %569 = vmatpush.bf16.msra.mxu0 %v543
        %570 = vmatmul.bf16.gmra.mxu0 %v557
        %v571 = vpop.f32.mrf.mxu0
        %v572 = vadd.f32 %v488, %v571
        %v573 = vpop.f32.mrf.mxu0
        %v574 = vadd.f32 %v489, %v573
        %575 = vmatmul.bf16.gmra.mxu0 %v560
        %v576 = vpop.f32.mrf.mxu0
        %v577 = vadd.f32 %v490, %v576
        %v578 = vpop.f32.mrf.mxu0
        %v579 = vadd.f32 %v491, %v578
        %580 = vdwg.mxu0
        %s581 = scalar_lea.vmem %s8, %s421
        %v582 = vld [vmem:[%s581] sm:$0xff]
        %v583 = vld [vmem:[%s581 + $0x8] sm:$0xff]
        %v584 = vld [vmem:[%s581 + $0x10] sm:$0xff]
        %v585 = vld [vmem:[%s581 + $0x18] sm:$0xff]
        %v586 = vld [vmem:[%s379] sm:$0xff]
        %v587 = vld [vmem:[%s379 + $0x8] sm:$0xff]
        %v588 = vld [vmem:[%s379 + $0x10] sm:$0xff]
        %v589 = vld [vmem:[%s379 + $0x18] sm:$0xff]
        %v590 = vld [vmem:[%s419] sm:$0x1]
        %v592 = vperm.slane %v590, 0
        %vm594 = vcmask 261120
        %v596 = vsel %vm594, %v582, 0
        %v599 = vsel %vm594, %v583, 0
        %v602 = vsel %vm594, %v584, 0
        %v605 = vsel %vm594, %v585, 0
        %607 = vmatpush.msra.mxu0 0.0
        %608 = vmatpush.msra.mxu0 0.0
        %609 = vmatpush.msra.mxu0 0.0
        %610 = vmatpush.msra.mxu0 0.0
        %611 = vmatpush.msra.mxu0 0.0
        %612 = vmatpush.msra.mxu0 0.0
        %613 = vmatpush.msra.mxu0 0.0
        %614 = vmatpush.msra.mxu0 0.0
        %615 = vmatpush.msra.mxu0 0.0
        %616 = vmatpush.msra.mxu0 0.0
        %617 = vmatpush.msra.mxu0 0.0
        %618 = vmatpush.msra.mxu0 0.0
        %619 = vmatpush.msra.mxu0 %v589
        %620 = vmatpush.msra.mxu0 %v588
        %621 = vmatpush.msra.mxu0 %v587
        %622 = vmatpush.msra.mxu0 %v586
        %623 = vmatmul.f32.gmra.mxu0 %v596
        %v624 = vpop.f32.mrf.mxu0
        %v625 = vadd.f32 %v592, %v624
        %626 = vmatmul.f32.gmra.mxu0 %v599
        %v627 = vpop.f32.mrf.mxu0
        %v628 = vadd.f32 %v592, %v627
        %629 = vmatmul.f32.gmra.mxu0 %v602
        %v630 = vpop.f32.mrf.mxu0
        %v631 = vadd.f32 %v592, %v630
        %632 = vmatmul.f32.gmra.mxu0 %v605
        %v633 = vpop.f32.mrf.mxu0
        %v634 = vadd.f32 %v592, %v633
        %635 = vdwg.mxu0
        %v636 = vadd.f32 %v572, %v625
        %v637 = vadd.f32 %v574, %v628
        %v638 = vadd.f32 %v577, %v631
        %v639 = vadd.f32 %v579, %v634
        %v640 = vxor.u32 %v636, 2147483648
        %v641 = vxor.u32 %v637, 2147483648
        %v642 = vxor.u32 %v638, 2147483648
        %v643 = vxor.u32 %v639, 2147483648
        %v644 = vmul.f32 %v640, 1.442695
        %v645 = vpow.pop %v644
        %v646 = vmul.f32 %v641, 1.442695
        %v647 = vpow.pop %v646
        %v648 = vmul.f32 %v642, 1.442695
        %v649 = vpow.pop %v648
        %v650 = vmul.f32 %v643, 1.442695
        %v651 = vpow.pop %v650
        %v652 = vadd.f32 %v645, 1.0
        %v653 = vadd.f32 %v647, 1.0
        %v654 = vadd.f32 %v649, 1.0
        %v655 = vadd.f32 %v651, 1.0
        %v656 = vrcp.pop %v652
        %v657 = vmul.f32 %v652, %v656
        %v658 = vsub.f32 1.0, %v657
        %v659 = vmul.f32 %v656, %v658
        %v660 = vadd.f32 %v656, %v659
        %vm661 = vweird.f32 %v652
        %vm662 = vweird.f32 %v656
        %vm663 = vmor %vm661, %vm662
        %v664 = vsel %vm663, %v656, %v660
        %v665 = vand.u32 2147483647, %v652
        %vm666 = vcmp.eq.f32.partialorder %v665, 8.507059e+37
        %v667 = vand.u32 %v652, 2147483648
        %v668 = vor.u32 1.1754944e-38, %v667
        %v669 = vsel %vm666, %v668, %v664
        %v670 = vmul.f32 1.0, %v669
        %v671 = vrcp.pop %v653
        %v672 = vmul.f32 %v653, %v671
        %v673 = vsub.f32 1.0, %v672
        %v674 = vmul.f32 %v671, %v673
        %v675 = vadd.f32 %v671, %v674
        %vm676 = vweird.f32 %v653
        %vm677 = vweird.f32 %v671
        %vm678 = vmor %vm676, %vm677
        %v679 = vsel %vm678, %v671, %v675
        %v680 = vand.u32 2147483647, %v653
        %vm681 = vcmp.eq.f32.partialorder %v680, 8.507059e+37
        %v682 = vand.u32 %v653, 2147483648
        %v683 = vor.u32 1.1754944e-38, %v682
        %v684 = vsel %vm681, %v683, %v679
        %v685 = vmul.f32 1.0, %v684
        %v686 = vrcp.pop %v654
        %v687 = vmul.f32 %v654, %v686
        %v688 = vsub.f32 1.0, %v687
        %v689 = vmul.f32 %v686, %v688
        %v690 = vadd.f32 %v686, %v689
        %vm691 = vweird.f32 %v654
        %vm692 = vweird.f32 %v686
        %vm693 = vmor %vm691, %vm692
        %v694 = vsel %vm693, %v686, %v690
        %v695 = vand.u32 2147483647, %v654
        %vm696 = vcmp.eq.f32.partialorder %v695, 8.507059e+37
        %v697 = vand.u32 %v654, 2147483648
        %v698 = vor.u32 1.1754944e-38, %v697
        %v699 = vsel %vm696, %v698, %v694
        %v700 = vmul.f32 1.0, %v699
        %v701 = vrcp.pop %v655
        %v702 = vmul.f32 %v655, %v701
        %v703 = vsub.f32 1.0, %v702
        %v704 = vmul.f32 %v701, %v703
        %v705 = vadd.f32 %v701, %v704
        %vm706 = vweird.f32 %v655
        %vm707 = vweird.f32 %v701
        %vm708 = vmor %vm706, %vm707
        %v709 = vsel %vm708, %v701, %v705
        %v710 = vand.u32 2147483647, %v655
        %vm711 = vcmp.eq.f32.partialorder %v710, 8.507059e+37
        %v712 = vand.u32 %v655, 2147483648
        %v713 = vor.u32 1.1754944e-38, %v712
        %v714 = vsel %vm711, %v713, %v709
        %v715 = vmul.f32 1.0, %v714
        %720 = vrot.lane.b32.xlu0 %v625, 64
        %v721 = vpop.permute.xlu0 %720
        %722 = vrot.lane.b32.xlu0 %v628, 64
        %v723 = vpop.permute.xlu0 %722
        %724 = vrot.lane.b32.xlu0 %v631, 64
        %v725 = vpop.permute.xlu0 %724
        %726 = vrot.lane.b32.xlu0 %v634, 64
        %v727 = vpop.permute.xlu0 %726
        %v732 = vmul.f32 %v670, %v721
        %v733 = vmul.f32 %v685, %v723
        %v734 = vmul.f32 %v700, %v725
        %v735 = vmul.f32 %v715, %v727
        %740 = vrot.lane.b32.xlu0 %v732, 64
        %v741 = vpop.permute.xlu0 %740
        %742 = vrot.lane.b32.xlu0 %v733, 64
        %v743 = vpop.permute.xlu0 %742
        %744 = vrot.lane.b32.xlu0 %v734, 64
        %v745 = vpop.permute.xlu0 %744
        %746 = vrot.lane.b32.xlu0 %v735, 64
        %v747 = vpop.permute.xlu0 %746
        %v752 = vadd.f32 %v572, %v741
        %v753 = vadd.f32 %v574, %v743
        %v754 = vadd.f32 %v577, %v745
        %v755 = vadd.f32 %v579, %v747
        %v756 = vtanh.pop %v752
        %v757 = vtanh.pop %v753
        %v758 = vtanh.pop %v754
        %v759 = vtanh.pop %v755
        %v760 = vsub.f32 1.0, %v670
        %v761 = vsub.f32 1.0, %v685
        %v762 = vsub.f32 1.0, %v700
        %v763 = vsub.f32 1.0, %v715
        %768 = vrot.lane.b32.xlu0 %v756, 96
        %v769 = vpop.permute.xlu0 %768
        %770 = vrot.lane.b32.xlu0 %v757, 96
        %v771 = vpop.permute.xlu0 %770
        %772 = vrot.lane.b32.xlu0 %v758, 96
        %v773 = vpop.permute.xlu0 %772
        %774 = vrot.lane.b32.xlu0 %v759, 96
        %v775 = vpop.permute.xlu0 %774
        %v780 = vmul.f32 %v760, %v769
        %v781 = vmul.f32 %v761, %v771
        %v782 = vmul.f32 %v762, %v773
        %v783 = vmul.f32 %v763, %v775
        %784 = vrot.lane.b32.xlu0 %v582, 32
        %v785 = vpop.permute.xlu0 %784
        %786 = vrot.lane.b32.xlu0 %v583, 32
        %v787 = vpop.permute.xlu0 %786
        %788 = vrot.lane.b32.xlu0 %v584, 32
        %v789 = vpop.permute.xlu0 %788
        %790 = vrot.lane.b32.xlu0 %v585, 32
        %v791 = vpop.permute.xlu0 %790
        %v796 = vmul.f32 %v670, %v785
        %v797 = vmul.f32 %v685, %v787
        %v798 = vmul.f32 %v700, %v789
        %v799 = vmul.f32 %v715, %v791
        %v800 = vadd.f32 %v780, %v796
        %v801 = vadd.f32 %v781, %v797
        %v802 = vadd.f32 %v782, %v798
        %v803 = vadd.f32 %v783, %v799
        %808 = vrot.lane.b32.xlu0 %v800, 96
        %v809 = vpop.permute.xlu0 %808
        %810 = vrot.lane.b32.xlu0 %v801, 96
        %v811 = vpop.permute.xlu0 %810
        %812 = vrot.lane.b32.xlu0 %v802, 96
        %v813 = vpop.permute.xlu0 %812
        %814 = vrot.lane.b32.xlu0 %v803, 96
        %v815 = vpop.permute.xlu0 %814
        %v820 = vsel %vm594, %v809, 0.0
        %821 = vadd.xlane.f32.xlu0 %v820
        %v822 = vpop.xlane.xlu0 %821
        %v823 = vsel %vm594, %v811, 0.0
        %824 = vadd.xlane.f32.xlu0 %v823
        %v825 = vpop.xlane.xlu0 %824
        %v826 = vsel %vm594, %v813, 0.0
        %827 = vadd.xlane.f32.xlu0 %v826
        %v828 = vpop.xlane.xlu0 %827
        %v829 = vsel %vm594, %v815, 0.0
        %830 = vadd.xlane.f32.xlu0 %v829
        %v831 = vpop.xlane.xlu0 %830
        %v832 = vrcp.pop 32.0
        %v833 = vmul.f32 32.0, %v832
        %v834 = vsub.f32 1.0, %v833
        %v835 = vmul.f32 %v832, %v834
        %v836 = vadd.f32 %v832, %v835
        %vm837 = vweird.f32 %v832
        %v838 = vsel %vm837, %v832, %v836
        %v839 = vmul.f32 %v822, %v838
        %v840 = vmul.f32 %v825, %v838
        %v841 = vmul.f32 %v828, %v838
        %v842 = vmul.f32 %v831, %v838
        %v843 = vsub.f32 %v800, %v839
        %v844 = vsub.f32 %v801, %v840
        %v845 = vsub.f32 %v802, %v841
        %v846 = vsub.f32 %v803, %v842
        %v847 = vmul.f32 %v843, %v843
        %v848 = vmul.f32 %v844, %v844
        %v849 = vmul.f32 %v845, %v845
        %v850 = vmul.f32 %v846, %v846
        %855 = vrot.lane.b32.xlu0 %v847, 96
        %v856 = vpop.permute.xlu0 %855
        %857 = vrot.lane.b32.xlu0 %v848, 96
        %v858 = vpop.permute.xlu0 %857
        %859 = vrot.lane.b32.xlu0 %v849, 96
        %v860 = vpop.permute.xlu0 %859
        %861 = vrot.lane.b32.xlu0 %v850, 96
        %v862 = vpop.permute.xlu0 %861
        %v867 = vsel %vm594, %v856, 0.0
        %868 = vadd.xlane.f32.xlu0 %v867
        %v869 = vpop.xlane.xlu0 %868
        %v870 = vsel %vm594, %v858, 0.0
        %871 = vadd.xlane.f32.xlu0 %v870
        %v872 = vpop.xlane.xlu0 %871
        %v873 = vsel %vm594, %v860, 0.0
        %874 = vadd.xlane.f32.xlu0 %v873
        %v875 = vpop.xlane.xlu0 %874
        %v876 = vsel %vm594, %v862, 0.0
        %877 = vadd.xlane.f32.xlu0 %v876
        %v878 = vpop.xlane.xlu0 %877
        %v879 = vmul.f32 %v869, %v838
        %v880 = vmul.f32 %v872, %v838
        %v881 = vmul.f32 %v875, %v838
        %v882 = vmul.f32 %v878, %v838
        %v883 = vadd.f32 %v879, 1e-05
        %v884 = vadd.f32 %v880, 1e-05
        %v885 = vadd.f32 %v881, 1e-05
        %v886 = vadd.f32 %v882, 1e-05
        %v887 = vrsqrt.pop %v883
        %v888 = vmul.f32 %v887, %v883
        %v889 = vmul.f32 %v888, %v887
        %v890 = vmul.f32 0.5, %v889
        %v891 = vsub.f32 1.5, %v890
        %v892 = vmul.f32 %v887, %v891
        %vm893 = vweird.f32 %v883
        %vm894 = vweird.f32 %v887
        %vm895 = vmor %vm893, %vm894
        %v896 = vsel %vm895, %v887, %v892
        %v897 = vrsqrt.pop %v884
        %v898 = vmul.f32 %v897, %v884
        %v899 = vmul.f32 %v898, %v897
        %v900 = vmul.f32 0.5, %v899
        %v901 = vsub.f32 1.5, %v900
        %v902 = vmul.f32 %v897, %v901
        %vm903 = vweird.f32 %v884
        %vm904 = vweird.f32 %v897
        %vm905 = vmor %vm903, %vm904
        %v906 = vsel %vm905, %v897, %v902
        %v907 = vrsqrt.pop %v885
        %v908 = vmul.f32 %v907, %v885
        %v909 = vmul.f32 %v908, %v907
        %v910 = vmul.f32 0.5, %v909
        %v911 = vsub.f32 1.5, %v910
        %v912 = vmul.f32 %v907, %v911
        %vm913 = vweird.f32 %v885
        %vm914 = vweird.f32 %v907
        %vm915 = vmor %vm913, %vm914
        %v916 = vsel %vm915, %v907, %v912
        %v917 = vrsqrt.pop %v886
        %v918 = vmul.f32 %v917, %v886
        %v919 = vmul.f32 %v918, %v917
        %v920 = vmul.f32 0.5, %v919
        %v921 = vsub.f32 1.5, %v920
        %v922 = vmul.f32 %v917, %v921
        %vm923 = vweird.f32 %v886
        %vm924 = vweird.f32 %v917
        %vm925 = vmor %vm923, %vm924
        %v926 = vsel %vm925, %v917, %v922
        %v927 = vmul.f32 %v843, %v896
        %v928 = vmul.f32 %v844, %v906
        %v929 = vmul.f32 %v845, %v916
        %v930 = vmul.f32 %v846, %v926
        %v931 = vld [vmem:[%s6] sm:$0x1]
        %v933 = vperm.slane %v931, 0
        %934 = vrot.lane.b32.xlu0 %v933, 32
        %v935 = vpop.permute.xlu0 %934
        %v937 = vmul.f32 %v927, %v935
        %v938 = vmul.f32 %v928, %v935
        %v939 = vmul.f32 %v929, %v935
        %v940 = vmul.f32 %v930, %v935
        %v941 = vld [vmem:[%s7] sm:$0x1]
        %v943 = vperm.slane %v941, 0
        %944 = vrot.lane.b32.xlu0 %v943, 32
        %v945 = vpop.permute.xlu0 %944
        %v947 = vadd.f32 %v937, %v945
        %v948 = vadd.f32 %v938, %v945
        %v949 = vadd.f32 %v939, %v945
        %v950 = vadd.f32 %v940, %v945
        %955 = vrot.lane.b32.xlu0 %v947, 96
        %v956 = vpop.permute.xlu0 %955
        %957 = vrot.lane.b32.xlu0 %v948, 96
        %v958 = vpop.permute.xlu0 %957
        %959 = vrot.lane.b32.xlu0 %v949, 96
        %v960 = vpop.permute.xlu0 %959
        %961 = vrot.lane.b32.xlu0 %v950, 96
        %v962 = vpop.permute.xlu0 %961
        %967 = vst.msk [vmem:[%s581] sm:$0xff] %vm594, %v956
        %968 = vst.msk [vmem:[%s581 + $0x8] sm:$0xff] %vm594, %v958
        %969 = vst.msk [vmem:[%s581 + $0x10] sm:$0xff] %vm594, %v960
        %970 = vst.msk [vmem:[%s581 + $0x18] sm:$0xff] %vm594, %v962
        %s971 = smul.u32 %s436, 96
        %s972 = sadd.s32 %s971, %s421
        %v973 = vld [vmem:[%s369] sm:$0xff]
        %v974 = vld [vmem:[%s369 + $0x8] sm:$0xff]
        %v975 = vld [vmem:[%s369 + $0x10] sm:$0xff]
        %v976 = vld [vmem:[%s369 + $0x18] sm:$0xff]
        %v977 = vsel %vm594, %v956, 0
        %v979 = vsel %vm594, %v958, 0
        %v981 = vsel %vm594, %v960, 0
        %v983 = vsel %vm594, %v962, 0
        %985 = vmatpush.msra.mxu0 0.0
        %986 = vmatpush.msra.mxu0 0.0
        %987 = vmatpush.msra.mxu0 0.0
        %988 = vmatpush.msra.mxu0 0.0
        %989 = vmatpush.msra.mxu0 0.0
        %990 = vmatpush.msra.mxu0 0.0
        %991 = vmatpush.msra.mxu0 0.0
        %992 = vmatpush.msra.mxu0 0.0
        %993 = vmatpush.msra.mxu0 0.0
        %994 = vmatpush.msra.mxu0 0.0
        %995 = vmatpush.msra.mxu0 0.0
        %996 = vmatpush.msra.mxu0 0.0
        %997 = vmatpush.msra.mxu0 %v976
        %998 = vmatpush.msra.mxu0 %v975
        %999 = vmatpush.msra.mxu0 %v974
        %1000 = vmatpush.msra.mxu0 %v973
        %1001 = vmatmul.f32.gmra.mxu0 %v977
        %v1002 = vpop.f32.mrf.mxu0
        %v1003 = vadd.f32 0.0, %v1002
        %1004 = vmatmul.f32.gmra.mxu0 %v979
        %v1005 = vpop.f32.mrf.mxu0
        %v1006 = vadd.f32 0.0, %v1005
        %1007 = vmatmul.f32.gmra.mxu0 %v981
        %v1008 = vpop.f32.mrf.mxu0
        %v1009 = vadd.f32 0.0, %v1008
        %1010 = vmatmul.f32.gmra.mxu0 %v983
        %v1011 = vpop.f32.mrf.mxu0
        %v1012 = vadd.f32 0.0, %v1011
        %1013 = vdwg.mxu0
        %v1014 = vpack.c.bf16 %v1003, %v1003
        %v1015 = vpack.c.bf16 %v1006, %v1006
        %v1016 = vpack.c.bf16 %v1009, %v1009
        %v1017 = vpack.c.bf16 %v1012, %v1012
        %s1018 = sshra.s32 %s972, 3
        %s1019 = sand.u32 %s972, 7
        %s1020 = smul.addr %s1018, 4
        %s1021 = scalar_lea.vmem [#allocation2], %s1020
        %vm1022 = vcmask 781312
        %1023 = vst.msk [vmem:[%s1021] sm:$0xf] %vm1022, %v1014
        %1024 = vst.msk [vmem:[%s1021 + $0x4] sm:$0xf] %vm1022, %v1015
        %1025 = vst.msk [vmem:[%s1021 + $0x8] sm:$0xf] %vm1022, %v1016
        %1026 = vst.msk [vmem:[%s1021 + $0xc] sm:$0xf] %vm1022, %v1017
        // Predicated region
        $region73: #{tpu_custom_call.1} parent=51 // pred_check
          %p1027 = pneg %p238
        $region74: #{tpu_custom_call.1} parent=51 // pred_check_branch
          %1029 = sbr.rel (%p1027) target = $region76
        $region75: #{tpu_custom_call.1} parent=51 // pred_region
          _
        $region76: #{tpu_custom_call.1} parent=51 // pred_fallthru
          _
        // Predicated region
        $region77: #{tpu_custom_call.1} parent=51 // pred_check
          %p1030 = pneg %p238
        $region78: #{tpu_custom_call.1} parent=51 // pred_check_branch
          %1032 = sbr.rel (%p1030) target = $region80
        $region79: #{tpu_custom_call.1} parent=51 // pred_region
          _
        $region80: #{tpu_custom_call.1} parent=51 // pred_fallthru
          _
      $region52: #{tpu_custom_call.1} parent=5 // pred_fallthru
        _
      %p1033 = scmp.le.s32.totalorder 2, %s16
      // Predicated region
      $region81: #{tpu_custom_call.1} parent=5 // pred_check
        %p1034 = pneg %p1033
      $region82: #{tpu_custom_call.1} parent=5 // pred_check_branch
        %1036 = sbr.rel (%p1034) target = $region84
      $region83: #{tpu_custom_call.1} parent=5 // pred_region
        %s1037 = ssub.s32 %s16, 2
      $region84: #{tpu_custom_call.1} parent=5 // pred_fallthru
        _
    $region6: #{tpu_custom_call.1} parent=1 // loop_footer
      %s20 = sadd.s32 1, %s16
    $region7: #{tpu_custom_call.1} parent=1 // loop_footer_branch
      %15 = sbr.rel target = $region3
    $region8: #{tpu_custom_call.1} parent=1 // loop_exit
      _
    %1038 = vsyncpa [#allocation4], 1
    %s1039 = scalar_lea.sflag [#allocation4], 1
    %1040 = vsyncpa %s1039, 1
    %1041 = vsyncpa [#allocation6], 1

</llo_original>
